<compile_context>
chip_gen: v5e
topology: v5e:2x2
jax: 0.10.0
libtpu: 0.0.40
codegen_flags: <defaults>
</compile_context>

<pallas_src>
import jax
import jax.numpy as jnp
from jax.experimental import pallas as pl
from jax.experimental.pallas import tpu as pltpu


# ----------------------------------------------------------------------------
# Small helpers
# ----------------------------------------------------------------------------
def _round_up(x: int, m: int) -> int:
    return ((x + m - 1) // m) * m


def _cdiv(a: int, b: int) -> int:
    return (a + b - 1) // b


def _num_tensorcores_per_chip() -> int:
    """v7x has 2 TensorCores per chip; v5e/v6e have 1. Default to 1 if unknown."""
    try:
        kind = jax.devices()[0].device_kind.lower()
    except Exception:
        return 1
    return 2 if ("v7" in kind or "7x" in kind) else 1


def _choose_batch_tile(batch: int, n_cores: int):
    """Pick (tile_rows, padded_batch) per the generation-specific grid advice."""
    if n_cores >= 2 and batch >= 16:
        # At least n_cores 'parallel' tiles so every TensorCore gets work,
        # capped at 128 rows per tile.
        tm = min(_round_up(_cdiv(batch, n_cores), 8), 128)
    else:
        # Single-TC chips: one big tile (fewest grid steps); cap the tile at
        # 1024 rows to bound VMEM while keeping padding waste small.
        n_tiles = _cdiv(batch, 1024)
        tm = _round_up(_cdiv(batch, n_tiles), 8)
    batch_p = _round_up(max(batch, tm), tm)
    return tm, batch_p


# ----------------------------------------------------------------------------
# Kernels
# ----------------------------------------------------------------------------
def _table_gather_kernel(idx_ref, table_ref, out_ref):
    """Folded path: out = one_hot(idx) @ out_table   (single MXU matmul, K=V)."""
    tm = out_ref.shape[0]
    vocab = table_ref.shape[0]
    idx = idx_ref[...]                                              # (TM, 1) i32
    iota_v = jax.lax.broadcasted_iota(jnp.int32, (tm, vocab), 1)    # (TM, V)
    one_hot = (iota_v == idx).astype(jnp.float32)                   # (TM, V)
    # Padded / out-of-range indices contribute a zero row (sliced off later).
    out_ref[...] = jnp.dot(one_hot, table_ref[...],
                           preferred_element_type=jnp.float32)      # lane-dense vst


def _mlp_kernel(idx_ref, emb_ref, w1_ref, b1_ref, w2_ref, b2_ref, out_ref):
    """Layered path: one-hot gather -> Linear+ReLU -> Linear, bf16 MXU operands."""
    tm = out_ref.shape[0]
    vocab = emb_ref.shape[0]
    mm_dtype = emb_ref.dtype                                        # bf16 operands
    idx = idx_ref[...]                                              # (TM, 1) i32
    iota_v = jax.lax.broadcasted_iota(jnp.int32, (tm, vocab), 1)    # (TM, V)
    one_hot = (iota_v == idx).astype(mm_dtype)                      # exact in bf16

    # Embedding gather as a one-hot MXU matmul; rows of a bf16 table -> exact.
    embedded = jnp.dot(one_hot, emb_ref[...],
                       preferred_element_type=jnp.float32).astype(mm_dtype)

    # Linear(E -> H) + ReLU: f32 accumulation, f32 VPU elementwise (v5e-safe).
    h = jnp.dot(embedded, w1_ref[...],
                preferred_element_type=jnp.float32) + b1_ref[...]
    h = jnp.maximum(h, 0.0).astype(mm_dtype)

    # Linear(H -> T_pad): f32 accumulation, lane-dense store.
    out_ref[...] = jnp.dot(h, w2_ref[...],
                           preferred_element_type=jnp.float32) + b2_ref[...]


# ----------------------------------------------------------------------------
# One-time weight preparation (hoisted out of the per-call path)
# ----------------------------------------------------------------------------
def prepare_taxonomy_probe(emb_table, w1, b1, w2, b2, *, fold=True,
                           matmul_dtype=jnp.bfloat16):
    """Cast / pad / (optionally) fold the weights ONCE. Reuse every forward."""
    emb_table = jnp.asarray(emb_table, jnp.float32)
    w1 = jnp.asarray(w1, jnp.float32)
    b1 = jnp.asarray(b1, jnp.float32).reshape(1, -1)
    w2 = jnp.asarray(w2, jnp.float32)
    b2 = jnp.asarray(b2, jnp.float32).reshape(1, -1)
    num_tax = w2.shape[1]
    t_pad = _round_up(max(num_tax, 1), 128)          # lane-dense output width

    if fold:
        # Exact f32 fold of the MLP over the 16-way categorical input.
        h_table = jnp.maximum(emb_table @ w1 + b1, 0.0)             # (V, H)
        out_table = h_table @ w2 + b2                               # (V, T)
        out_table = jnp.pad(out_table, ((0, 0), (0, t_pad - num_tax)))
        params = dict(fold=True, table=out_table,
                      vocab=emb_table.shape[0], num_tax=num_tax, t_pad=t_pad)
    else:
        params = dict(
            fold=False,
            emb=emb_table.astype(matmul_dtype),
            w1=w1.astype(matmul_dtype),
            b1=b1,
            w2=jnp.pad(w2, ((0, 0), (0, t_pad - num_tax))).astype(matmul_dtype),
            b2=jnp.pad(b2, ((0, 0), (0, t_pad - num_tax))),
            vocab=emb_table.shape[0], num_tax=num_tax, t_pad=t_pad)

    for v in params.values():                         # pay the prep cost here, once
        if isinstance(v, jax.Array):
            v.block_until_ready()
    return params


# ----------------------------------------------------------------------------
# Forward
# ----------------------------------------------------------------------------
def _taxonomy_probe_impl(idx, params, tm, batch_p):
    batch = idx.shape[0]
    t_pad = params["t_pad"]
    vocab = params["vocab"]

    idx_p = jnp.pad(idx.astype(jnp.int32), (0, batch_p - batch)).reshape(batch_p, 1)
    grid = (batch_p // tm,)

    idx_spec = pl.BlockSpec((tm, 1), lambda i: (i, 0))
    out_spec = pl.BlockSpec((tm, t_pad), lambda i: (i, 0))
    full = lambda shape: pl.BlockSpec(shape, lambda i: (0, 0))   # resident weights
    # TODO(synk): the constant-index weight specs could take
    # pipeline_mode=pl.Buffered(1) to drop the unused second pipeline buffer;
    # at <0.3 MiB of resident weights this is noise, so keep defaults.

    if params["fold"]:
        table = params["table"]
        flops = 2 * batch_p * vocab * t_pad
        bytes_accessed = 4 * (idx_p.size + table.size + batch_p * t_pad)
        out_p = pl.pallas_call(
            _table_gather_kernel,
            out_shape=jax.ShapeDtypeStruct((batch_p, t_pad), jnp.float32),
            grid=grid,
            in_specs=[idx_spec, full((vocab, t_pad))],
            out_specs=out_spec,
            compiler_params=pltpu.CompilerParams(
                dimension_semantics=("parallel",)),
            cost_estimate=pl.CostEstimate(flops=flops, transcendentals=0,
                                          bytes_accessed=bytes_accessed),
        )(idx_p, table)
    else:
        emb, w1, b1, w2, b2 = (params["emb"], params["w1"], params["b1"],
                               params["w2"], params["b2"])
        e_dim, h_dim = w1.shape
        flops = 2 * batch_p * (vocab * e_dim + e_dim * h_dim + h_dim * t_pad)
        bytes_accessed = ((emb.size + w1.size + w2.size) * emb.dtype.itemsize
                          + 4 * (idx_p.size + b1.size + b2.size + batch_p * t_pad))
        out_p = pl.pallas_call(
            _mlp_kernel,
            out_shape=jax.ShapeDtypeStruct((batch_p, t_pad), jnp.float32),
            grid=grid,
            in_specs=[idx_spec, full((vocab, e_dim)), full((e_dim, h_dim)),
                      full((1, h_dim)), full((h_dim, t_pad)), full((1, t_pad))],
            out_specs=out_spec,
            compiler_params=pltpu.CompilerParams(
                dimension_semantics=("parallel",)),
            cost_estimate=pl.CostEstimate(flops=flops, transcendentals=0,
                                          bytes_accessed=bytes_accessed),
        )(idx_p, emb, w1, b1, w2, b2)

    return out_p[:batch, :params["num_tax"]]


def make_taxonomy_probe_fn(emb_table, w1, b1, w2, b2, *, fold=True,
                           matmul_dtype=jnp.bfloat16):
    """Prepare weights once and return a jitted forward: idx (B,) -> (B, T)."""
    params = prepare_taxonomy_probe(emb_table, w1, b1, w2, b2, fold=fold,
                                    matmul_dtype=matmul_dtype)
    n_cores = _num_tensorcores_per_chip()

    @jax.jit
    def forward(idx):
        tm, batch_p = _choose_batch_tile(idx.shape[0], n_cores)
        return _taxonomy_probe_impl(idx, params, tm, batch_p)

    return forward


# ----------------------------------------------------------------------------
# Pure-JAX reference (mirrors the PyTorch module)
# ----------------------------------------------------------------------------
def _reference_forward(idx, emb_table, w1, b1, w2, b2):
    embedded = emb_table[idx]
    h = jnp.maximum(embedded @ w1 + b1.reshape(1, -1), 0.0)
    return h @ w2 + b2.reshape(1, -1)


if __name__ == "__main__":
    # Small shapes consistent with the module defaults.
    batch = 8
    num_attributes = 16      # embedding vocab size
    num_taxonomies = 8       # output classes
    embedding_dim = 128
    hidden_dim = 256

    key = jax.random.PRNGKey(0)
    k_idx, k_emb, k_w1, k_b1, k_w2, k_b2 = jax.random.split(key, 6)

    # Deterministic synthetic parameters (shapes from __init__; not a checkpoint).
    idx = jax.random.randint(k_idx, (batch,), 0, num_attributes, dtype=jnp.int32)
    emb_table = jax.random.normal(k_emb, (num_attributes, embedding_dim),
                                  jnp.float32) * 0.1
    # PyTorch Linear stores (out, in); we store the transpose (in, out).
    w1 = jax.random.normal(k_w1, (embedding_dim, hidden_dim), jnp.float32) * 0.05
    b1 = jax.random.normal(k_b1, (hidden_dim,), jnp.float32) * 0.05
    w2 = jax.random.normal(k_w2, (hidden_dim, num_taxonomies), jnp.float32) * 0.05
    b2 = jax.random.normal(k_b2, (num_taxonomies,), jnp.float32) * 0.05

    ref = _reference_forward(idx, emb_table, w1, b1, w2, b2)

    # Folded (default, fastest) path: weights folded once into a (V, T) table;
    # kernel is a single one-hot gather-matmul. Exact in f32 -> tight tolerance.
    fwd_folded = make_taxonomy_probe_fn(emb_table, w1, b1, w2, b2, fold=True)
    out = jax.block_until_ready(fwd_folded(idx))
    assert out.shape == (batch, num_taxonomies)
    assert jnp.allclose(out, ref, atol=1e-4, rtol=1e-4), "folded mismatch (B=8)"

    # Layered kernel (bf16 MXU operands, f32 accumulation/elementwise).
    fwd_mlp = make_taxonomy_probe_fn(emb_table, w1, b1, w2, b2, fold=False)
    out_mlp = jax.block_until_ready(fwd_mlp(idx))
    assert out_mlp.shape == (batch, num_taxonomies)
    assert jnp.allclose(out_mlp, ref, atol=2e-2, rtol=2e-2), "mlp mismatch (B=8)"

    # Larger batch exercising the gridded / padded path.
    big_batch = 200
    idx_big = jax.random.randint(jax.random.PRNGKey(1), (big_batch,), 0,
                                 num_attributes, dtype=jnp.int32)
    ref_big = _reference_forward(idx_big, emb_table, w1, b1, w2, b2)
    out_big = jax.block_until_ready(fwd_folded(idx_big))
    assert out_big.shape == (big_batch, num_taxonomies)
    assert jnp.allclose(out_big, ref_big, atol=1e-4, rtol=1e-4), \
        "folded mismatch (B=200)"

    print("KERNEL_OK")
</pallas_src>

<mosaic_0001>
module attributes {stable_mosaic.version = 11 : i64} {
  func.func @_table_gather_kernel(%arg0: i32, %arg1: memref<8x1xi32, #tpu.memory_space<vmem>>, %arg2: memref<16x128xf32, #tpu.memory_space<vmem>>, %arg3: memref<8x128xf32, #tpu.memory_space<vmem>>) attributes {dimension_semantics = [#tpu.dimension_semantics<parallel>], iteration_bounds = array<i64: 1>, scalar_prefetch = 0 : i64, scratch_operands = 0 : i64, tpu.core_type = #tpu.core_type<tc>, window_params = [{transform_indices = @transform_0, window_bounds = array<i64: 8, 1>}, {pipeline_mode = #tpu.pipeline_mode<synchronous>, transform_indices = @transform_1, window_bounds = array<i64: 16, 128>}, {transform_indices = @transform_2, window_bounds = array<i64: 8, 128>}]} {
    %c0 = arith.constant 0 : index
    %c0_0 = arith.constant 0 : index
    %0 = vector.load %arg1[%c0, %c0_0] : memref<8x1xi32, #tpu.memory_space<vmem>>, vector<8x1xi32>
    %1 = tpu.iota {dimensions = array<i32: 1>} : vector<8x16xi32>
    %2 = vector.broadcast %0 : vector<8x1xi32> to vector<8x16xi32>
    %3 = arith.cmpi eq, %1, %2 : vector<8x16xi32>
    %4 = arith.extui %3 : vector<8x16xi1> to vector<8x16xi32>
    %5 = arith.sitofp %4 : vector<8x16xi32> to vector<8x16xf32>
    %c0_1 = arith.constant 0 : index
    %c0_2 = arith.constant 0 : index
    %6 = vector.load %arg2[%c0_1, %c0_2] : memref<16x128xf32, #tpu.memory_space<vmem>>, vector<16x128xf32>
    %cst = arith.constant dense<0.000000e+00> : vector<8x128xf32>
    %7 = tpu.matmul %5, %6, %cst {dimension_numbers = #tpu.dot_dimension_numbers<[1], [0], [0], [1], [0, 0, 1, 1], [], []>} : vector<8x16xf32>, vector<16x128xf32>, vector<8x128xf32> -> vector<8x128xf32>
    %c0_3 = arith.constant 0 : index
    %c0_4 = arith.constant 0 : index
    %8 = vector.load %arg3[%c0_3, %c0_4] : memref<8x128xf32, #tpu.memory_space<vmem>>, vector<8x128xf32>
    tpu.vector_store %arg3[%c0_3, %c0_4], %7 {strides = array<i32>} : memref<8x128xf32, #tpu.memory_space<vmem>>, vector<8x128xf32>,
    return
  }
  func.func @transform_0(%arg0: i32) -> (i32, i32) {
    %c0_i32 = arith.constant 0 : i32
    %c0_i32_0 = arith.constant 0 : i32
    return %arg0, %c0_i32 : i32, i32
  }
  func.func @transform_1(%arg0: i32) -> (i32, i32) {
    %c0_i32 = arith.constant 0 : i32
    %c0_i32_0 = arith.constant 0 : i32
    %c0_i32_1 = arith.constant 0 : i32
    return %c0_i32, %c0_i32_0 : i32, i32
  }
  func.func @transform_2(%arg0: i32) -> (i32, i32) {
    %c0_i32 = arith.constant 0 : i32
    %c0_i32_0 = arith.constant 0 : i32
    return %arg0, %c0_i32 : i32, i32
  }
}

</mosaic_0001>

<llo_original>
// kernel: forward.1
$region0: #{forward.1}
  #allocation0 [shape = 'u32[]', space=smem, size = 0x4, offset = 0x4, fixed_abs, tag = 'smem constant byte address 0x4 - core index']
  #allocation1 [shape = 'u32[72,128]{1,0:T(1,128)}', space=vmem, size = 0x9000, scoped, tag = 'internal scratch']
  %s0 = inlined_call_operand.vmem [shape: s32[8,1], index: 0, kind: input, shape index: {}]
  %s1 = inlined_call_operand.hbm [shape: f32[16,128], index: 1, kind: input, shape index: {}]
  %s2 = inlined_call_operand.hbm [shape: f32[8,128], index: 2, kind: output, shape index: {}]
  %s3 = sld [smem:[#allocation0]]
  $region22: #{forward.1} parent=0
    _
  %s5 = ssub.s32 1, %s3
  %s6 = scalar_select 0, %s5, %s3
  $region1: #{forward.1} parent=0
    #allocation2 [shape = 'u8[8192]{0}', space=vmem, size = 0x2000, scoped, tag = 'input window, operand 1, single buffered']
    #allocation3 [shape = 's32[1]{0}', space=sflag, size = 0x4, scoped, tag = 'scoped memory for forward.1']
    #allocation4 [shape = 's32[1]{0}', space=sflag, size = 0x4, scoped, tag = 'scoped memory for forward.1']
    #allocation5 [shape = 'u8[4096]{0}', space=vmem, size = 0x1000, scoped, tag = 'output window, operand 0, single buffered']
    %7 = vsyncpa [#allocation3], 0
    %8 = vsyncpa [#allocation4], 0
    // Predicated region
    $region2: #{forward.1} parent=1 // pred_check
      _
    $region3: #{forward.1} parent=1 // pred_check_branch
      %10 = sbr.rel (0) target = $region5
    $region4: #{forward.1} parent=1 // pred_region
      _
    $region5: #{forward.1} parent=1 // pred_fallthru
      _
    // Predicated region
    $region6: #{forward.1} parent=1 // pred_check
      _
    $region7: #{forward.1} parent=1 // pred_check_branch
      %12 = sbr.rel (0) target = $region9
    $region8: #{forward.1} parent=1 // pred_region
      %14 = vsyncadd [#allocation3], 0
      %s15 = sshll.u32 %s1, 4
      %s16 = int_to_ptr.hbm [resolvable:$true] %s15
      %s17 = sshll.u32 [#allocation2], 4
      %s18 = int_to_ptr.vmem [resolvable:$true] %s17
      %23 = dma.hbm_to_vmem [thread:$0]  %s16, 256, %s18, [#allocation3], 128, 128, 8
    $region9: #{forward.1} parent=1 // pred_fallthru
      _
    // Predicated region
    $region10: #{forward.1} parent=1 // pred_check
      _
    $region11: #{forward.1} parent=1 // pred_check_branch
      %25 = sbr.rel (0) target = $region13
    $region12: #{forward.1} parent=1 // pred_region
      %27 = dma.done [#allocation3], 256
    $region13: #{forward.1} parent=1 // pred_fallthru
      _
    %v28 = vld [vmem:[%s0] sm:$0xff]
    %v29 = vlaneseq
    %v30 = vand.u32 %v29, 127
    %31 = vset.pattern.permute.xlu0 0
    %32 = vperm.xlu0 %31, %v28
    %v33 = vpop.permute.xlu0 %32
    %vm34 = vcmp.eq.s32.totalorder %v30, %v33
    %v35 = vsel %vm34, 1, 0
    %v36 = vcvt.s32.f32 %v35
    %v37 = vld [vmem:[#allocation2] sm:$0xff]
    %v38 = vld [vmem:[#allocation2 + $0x8] sm:$0xff]
    %vm39 = vcmask 130048
    %v41 = vsel %vm39, %v36, 0
    %43 = vmatpush.msra.mxu0 0.0
    %44 = vmatpush.msra.mxu0 0.0
    %45 = vmatpush.msra.mxu0 0.0
    %46 = vmatpush.msra.mxu0 0.0
    %47 = vmatpush.msra.mxu0 0.0
    %48 = vmatpush.msra.mxu0 0.0
    %49 = vmatpush.msra.mxu0 0.0
    %50 = vmatpush.msra.mxu0 0.0
    %51 = vmatpush.msra.mxu0 0.0
    %52 = vmatpush.msra.mxu0 0.0
    %53 = vmatpush.msra.mxu0 0.0
    %54 = vmatpush.msra.mxu0 0.0
    %55 = vmatpush.msra.mxu0 0.0
    %56 = vmatpush.msra.mxu0 0.0
    %57 = vmatpush.msra.mxu0 %v38
    %58 = vmatpush.msra.mxu0 %v37
    %59 = vmatmul.f32.gmra.mxu0 %v41
    %v60 = vpop.f32.mrf.mxu0
    %v61 = vadd.f32 0.0, %v60
    %62 = vdwg.mxu0
    %63 = vst [vmem:[#allocation5] sm:$0xff] %v61
    // Predicated region
    $region14: #{forward.1} parent=1 // pred_check
      _
    $region15: #{forward.1} parent=1 // pred_check_branch
      %65 = sbr.rel (0) target = $region17
    $region16: #{forward.1} parent=1 // pred_region
      %67 = vsyncadd [#allocation4], 0
      %s69 = sshll.u32 [#allocation5], 4
      %s70 = int_to_ptr.vmem [resolvable:$true] %s69
      %s71 = sshll.u32 %s2, 4
      %s72 = int_to_ptr.hbm [resolvable:$true] %s71
      %74 = dma.vmem_to_hbm [thread:$0]  %s70, 128, %s72, [#allocation4]
    $region17: #{forward.1} parent=1 // pred_fallthru
      _
    // Predicated region
    $region18: #{forward.1} parent=1 // pred_check
      _
    $region19: #{forward.1} parent=1 // pred_check_branch
      %76 = sbr.rel (0) target = $region21
    $region20: #{forward.1} parent=1 // pred_region
      %78 = dma.done [#allocation4], 128
    $region21: #{forward.1} parent=1 // pred_fallthru
      _
    %79 = vsyncpa [#allocation3], 1
    %80 = vsyncpa [#allocation4], 1

</llo_original>
